<compile_context>
chip_gen: v7x
topology: tpu7x:2x2x1
jax: 0.10.0
libtpu: 0.0.40
codegen_flags: <defaults>
</compile_context>

<pallas_src>
import functools

import jax
import jax.numpy as jnp
from jax.experimental import pallas as pl
from jax.experimental.pallas import tpu as pltpu


def _score_kernel(h_ref, c_ref, tok_ref,
                  w_h_ref, w_c_ref, w_t_ref, w_b_ref,
                  s_w_ref, s_b_ref,
                  out_ref, *, neg_slope):
    G, C, H = tok_ref.shape
    f32 = jnp.float32

    h = h_ref[...]                                   # (G, H)
    c = c_ref[...]                                   # (G, H)
    tok = tok_ref[...].reshape(G * C, H)             # fold batch*class into M

    # hidden/context contribution: computed once per batch row (it is constant
    # across classes in the reference, because hc is expand()-ed).
    hc = (jnp.dot(h, w_h_ref[...], preferred_element_type=f32)
          + jnp.dot(c, w_c_ref[...], preferred_element_type=f32)
          + w_b_ref[...])                            # (G, H)

    # token contribution: one (G*C, H) x (H, H) MXU matmul.
    tp = jnp.dot(tok, w_t_ref[...], preferred_element_type=f32)
    pre = tp.reshape(G, C, H) + hc[:, None, :]       # broadcast over classes

    # leaky_relu (default negative_slope = 0.01, matching F.leaky_relu)
    act = jnp.where(pre >= 0, pre, neg_slope * pre)  # (G, C, H)

    # score head (out_features = 1): multiply + cross-lane reduce on the XLU
    # instead of an N=1 matmul; produces a lane-dense (G, C) result directly.
    sc = jnp.sum(act * s_w_ref[...].reshape(1, 1, H), axis=-1)   # (G, C)
    out_ref[...] = (sc + s_b_ref[...]).astype(out_ref.dtype)


def score_model_forward(params, hidden, context, token_embeddings,
                        *, neg_slope=0.01, batch_block=8):
    """ScoreModel.forward.  Returns score of shape (B, C)."""
    B, C, H = token_embeddings.shape
    f32 = jnp.float32

    # Pick a batch block size: G batches per grid step (sublane rule: G must be
    # a multiple of 8 or equal to the full batch dim).
    if B % batch_block == 0 and (batch_block % 8 == 0 or batch_block == B):
        G = batch_block
    else:
        G = B
    grid = (B // G,)

    data = [hidden.astype(f32), context.astype(f32),
            token_embeddings.astype(f32)]
    param_names = ("w_h", "w_c", "w_t", "w_b", "s_w", "s_b")
    param_list = [params[n].astype(f32) for n in param_names]

    in_specs = [
        pl.BlockSpec((G, H), lambda b: (b, 0)),          # hidden
        pl.BlockSpec((G, H), lambda b: (b, 0)),          # context
        pl.BlockSpec((G, C, H), lambda b: (b, 0, 0)),    # token_embeddings
    ] + [
        pl.BlockSpec(p.shape, lambda b, _nd=p.ndim: (0,) * _nd)
        for p in param_list                              # weights: resident
    ]
    out_specs = pl.BlockSpec((G, C), lambda b: (b, 0))
    out_shape = jax.ShapeDtypeStruct((B, C), f32)

    kernel = functools.partial(_score_kernel, neg_slope=float(neg_slope))

    return pl.pallas_call(
        kernel,
        out_shape=out_shape,
        grid_spec=pltpu.PrefetchScalarGridSpec(
            num_scalar_prefetch=0,
            grid=grid,
            in_specs=in_specs,
            out_specs=out_specs,
        ),
        compiler_params=pltpu.CompilerParams(
            dimension_semantics=("parallel",),      # shard batch across TCs (v7x)
            vmem_limit_bytes=32 * 1024 * 1024,      # explicit, safe on v7x too
        ),
    )(*data, *param_list)


def init_params(key, H):
    """Deterministic parameters.  Linear weights stored (in, out); the 3H-wide
    first layer is pre-split into per-input-segment blocks (hidden|context|token)."""
    k1, k2, k3, k4 = jax.random.split(key, 4)
    w = jax.random.normal(k1, (3 * H, H), jnp.float32) / jnp.sqrt(3.0 * H)
    b = 0.01 * jax.random.normal(k2, (1, H), jnp.float32)
    s_w = jax.random.normal(k3, (1, H), jnp.float32) / jnp.sqrt(float(H))
    s_b = 0.01 * jax.random.normal(k4, (1, 1), jnp.float32)
    return {
        "w_h": w[:H], "w_c": w[H:2 * H], "w_t": w[2 * H:], "w_b": b,
        "s_w": s_w, "s_b": s_b,
    }


def score_model_ref(params, hidden, context, token_embeddings, neg_slope=0.01):
    """Pure-JAX reference mirroring the PyTorch forward (cat + Linear)."""
    B, C, H = token_embeddings.shape
    w = jnp.concatenate([params["w_h"], params["w_c"], params["w_t"]], axis=0)
    hc = jnp.concatenate([hidden, context], axis=-1)                  # (B, 2H)
    hc = jnp.broadcast_to(hc[:, None, :], (B, C, 2 * H))
    x = jnp.concatenate([hc, token_embeddings], axis=-1)              # (B, C, 3H)
    pre = x @ w + params["w_b"][0]
    act = jnp.where(pre >= 0, pre, neg_slope * pre)
    score = jnp.einsum("bch,h->bc", act, params["s_w"][0]) + params["s_b"][0, 0]
    return score


if __name__ == "__main__":
    B, C, H = 16, 8, 32   # batch, class_size, hidden_size

    key = jax.random.PRNGKey(0)
    k1, k2, k3, k4 = jax.random.split(key, 4)
    hidden = jax.random.normal(k1, (B, H), jnp.float32)
    context = jax.random.normal(k2, (B, H), jnp.float32)
    token_embeddings = jax.random.normal(k3, (B, C, H), jnp.float32)
    params = init_params(k4, H)

    score = score_model_forward(params, hidden, context, token_embeddings,
                                batch_block=8)
    jax.block_until_ready(score)

    ref = score_model_ref(params, hidden, context, token_embeddings)
    if not bool(jnp.allclose(score, ref, atol=1e-4, rtol=1e-4)):
        raise SystemExit("mismatch vs pure-JAX reference")
    print("KERNEL_OK")
</pallas_src>

<mosaic_0001>
module attributes {stable_mosaic.version = 11 : i64} {
  func.func @_score_kernel(%arg0: i32, %arg1: memref<8x32xf32, #tpu.memory_space<vmem>>, %arg2: memref<8x32xf32, #tpu.memory_space<vmem>>, %arg3: memref<8x8x32xf32, #tpu.memory_space<vmem>>, %arg4: memref<32x32xf32, #tpu.memory_space<vmem>>, %arg5: memref<32x32xf32, #tpu.memory_space<vmem>>, %arg6: memref<32x32xf32, #tpu.memory_space<vmem>>, %arg7: memref<1x32xf32, #tpu.memory_space<vmem>>, %arg8: memref<1x32xf32, #tpu.memory_space<vmem>>, %arg9: memref<1x1xf32, #tpu.memory_space<vmem>>, %arg10: memref<8x8xf32, #tpu.memory_space<vmem>>) attributes {dimension_semantics = [#tpu.dimension_semantics<parallel>], iteration_bounds = array<i64: 2>, scalar_prefetch = 0 : i64, scratch_operands = 0 : i64, tpu.core_type = #tpu.core_type<tc>, window_params = [{transform_indices = @transform_0, window_bounds = array<i64: 8, 32>}, {transform_indices = @transform_1, window_bounds = array<i64: 8, 32>}, {transform_indices = @transform_2, window_bounds = array<i64: 8, 8, 32>}, {pipeline_mode = #tpu.pipeline_mode<synchronous>, transform_indices = @transform_3, window_bounds = array<i64: 32, 32>}, {pipeline_mode = #tpu.pipeline_mode<synchronous>, transform_indices = @transform_4, window_bounds = array<i64: 32, 32>}, {pipeline_mode = #tpu.pipeline_mode<synchronous>, transform_indices = @transform_5, window_bounds = array<i64: 32, 32>}, {pipeline_mode = #tpu.pipeline_mode<synchronous>, transform_indices = @transform_6, window_bounds = array<i64: 1, 32>}, {pipeline_mode = #tpu.pipeline_mode<synchronous>, transform_indices = @transform_7, window_bounds = array<i64: 1, 32>}, {pipeline_mode = #tpu.pipeline_mode<synchronous>, transform_indices = @transform_8, window_bounds = array<i64: 1, 1>}, {transform_indices = @transform_9, window_bounds = array<i64: 8, 8>}]} {
    %c0 = arith.constant 0 : index
    %c0_0 = arith.constant 0 : index
    %0 = vector.load %arg1[%c0, %c0_0] : memref<8x32xf32, #tpu.memory_space<vmem>>, vector<8x32xf32>
    %c0_1 = arith.constant 0 : index
    %c0_2 = arith.constant 0 : index
    %1 = vector.load %arg2[%c0_1, %c0_2] : memref<8x32xf32, #tpu.memory_space<vmem>>, vector<8x32xf32>
    %c0_3 = arith.constant 0 : index
    %c0_4 = arith.constant 0 : index
    %c0_5 = arith.constant 0 : index
    %2 = vector.load %arg3[%c0_3, %c0_4, %c0_5] : memref<8x8x32xf32, #tpu.memory_space<vmem>>, vector<8x8x32xf32>
    %3 = vector.shape_cast %2 : vector<8x8x32xf32> to vector<64x32xf32>
    %c0_6 = arith.constant 0 : index
    %c0_7 = arith.constant 0 : index
    %4 = vector.load %arg4[%c0_6, %c0_7] : memref<32x32xf32, #tpu.memory_space<vmem>>, vector<32x32xf32>
    %cst = arith.constant dense<0.000000e+00> : vector<8x32xf32>
    %5 = tpu.matmul %0, %4, %cst {dimension_numbers = #tpu.dot_dimension_numbers<[1], [0], [0], [1], [0, 0, 1, 1], [], []>} : vector<8x32xf32>, vector<32x32xf32>, vector<8x32xf32> -> vector<8x32xf32>
    %c0_8 = arith.constant 0 : index
    %c0_9 = arith.constant 0 : index
    %6 = vector.load %arg5[%c0_8, %c0_9] : memref<32x32xf32, #tpu.memory_space<vmem>>, vector<32x32xf32>
    %cst_10 = arith.constant dense<0.000000e+00> : vector<8x32xf32>
    %7 = tpu.matmul %1, %6, %cst_10 {dimension_numbers = #tpu.dot_dimension_numbers<[1], [0], [0], [1], [0, 0, 1, 1], [], []>} : vector<8x32xf32>, vector<32x32xf32>, vector<8x32xf32> -> vector<8x32xf32>
    %8 = arith.addf %5, %7 : vector<8x32xf32>
    %c0_11 = arith.constant 0 : index
    %c0_12 = arith.constant 0 : index
    %9 = vector.load %arg7[%c0_11, %c0_12] : memref<1x32xf32, #tpu.memory_space<vmem>>, vector<1x32xf32>
    %10 = vector.broadcast %9 : vector<1x32xf32> to vector<8x32xf32>
    %11 = arith.addf %8, %10 : vector<8x32xf32>
    %c0_13 = arith.constant 0 : index
    %c0_14 = arith.constant 0 : index
    %12 = vector.load %arg6[%c0_13, %c0_14] : memref<32x32xf32, #tpu.memory_space<vmem>>, vector<32x32xf32>
    %cst_15 = arith.constant dense<0.000000e+00> : vector<64x32xf32>
    %13 = tpu.matmul %3, %12, %cst_15 {dimension_numbers = #tpu.dot_dimension_numbers<[1], [0], [0], [1], [0, 0, 1, 1], [], []>} : vector<64x32xf32>, vector<32x32xf32>, vector<64x32xf32> -> vector<64x32xf32>
    %14 = vector.shape_cast %13 : vector<64x32xf32> to vector<8x8x32xf32>
    %15 = vector.shape_cast %11 : vector<8x32xf32> to vector<8x1x32xf32>
    %16 = vector.broadcast %15 : vector<8x1x32xf32> to vector<8x8x32xf32>
    %17 = arith.addf %14, %16 : vector<8x8x32xf32>
    %cst_16 = arith.constant 0.000000e+00 : f32
    %18 = vector.broadcast %cst_16 : f32 to vector<8x8x32xf32>
    %19 = arith.cmpf oge, %17, %18 : vector<8x8x32xf32>
    %cst_17 = arith.constant 0.00999999977 : f32
    %20 = vector.broadcast %cst_17 : f32 to vector<8x8x32xf32>
    %21 = arith.mulf %20, %17 : vector<8x8x32xf32>
    %22 = arith.select %19, %17, %21 : vector<8x8x32xi1>, vector<8x8x32xf32>
    %c0_18 = arith.constant 0 : index
    %c0_19 = arith.constant 0 : index
    %23 = vector.load %arg8[%c0_18, %c0_19] : memref<1x32xf32, #tpu.memory_space<vmem>>, vector<1x32xf32>
    %24 = vector.shape_cast %23 : vector<1x32xf32> to vector<1x1x32xf32>
    %25 = vector.broadcast %24 : vector<1x1x32xf32> to vector<8x8x32xf32>
    %26 = arith.mulf %22, %25 : vector<8x8x32xf32>
    %cst_20 = arith.constant dense<0.000000e+00> : vector<8x8xf32>
    %27 = vector.multi_reduction <add>, %26, %cst_20 [2] : vector<8x8x32xf32> to vector<8x8xf32>
    %c0_21 = arith.constant 0 : index
    %c0_22 = arith.constant 0 : index
    %28 = vector.load %arg9[%c0_21, %c0_22] : memref<1x1xf32, #tpu.memory_space<vmem>>, vector<1x1xf32>
    %29 = vector.broadcast %28 : vector<1x1xf32> to vector<8x8xf32>
    %30 = arith.addf %27, %29 : vector<8x8xf32>
    %c0_23 = arith.constant 0 : index
    %c0_24 = arith.constant 0 : index
    %31 = vector.load %arg10[%c0_23, %c0_24] : memref<8x8xf32, #tpu.memory_space<vmem>>, vector<8x8xf32>
    tpu.vector_store %arg10[%c0_23, %c0_24], %30 {strides = array<i32>} : memref<8x8xf32, #tpu.memory_space<vmem>>, vector<8x8xf32>,
    return
  }
  func.func @transform_0(%arg0: i32) -> (i32, i32) {
    %c0_i32 = arith.constant 0 : i32
    %c0_i32_0 = arith.constant 0 : i32
    return %arg0, %c0_i32 : i32, i32
  }
  func.func @transform_1(%arg0: i32) -> (i32, i32) {
    %c0_i32 = arith.constant 0 : i32
    %c0_i32_0 = arith.constant 0 : i32
    return %arg0, %c0_i32 : i32, i32
  }
  func.func @transform_2(%arg0: i32) -> (i32, i32, i32) {
    %c0_i32 = arith.constant 0 : i32
    %c0_i32_0 = arith.constant 0 : i32
    %c0_i32_1 = arith.constant 0 : i32
    return %arg0, %c0_i32, %c0_i32_0 : i32, i32, i32
  }
  func.func @transform_3(%arg0: i32) -> (i32, i32) {
    %c0_i32 = arith.constant 0 : i32
    %c0_i32_0 = arith.constant 0 : i32
    %c0_i32_1 = arith.constant 0 : i32
    return %c0_i32, %c0_i32_0 : i32, i32
  }
  func.func @transform_4(%arg0: i32) -> (i32, i32) {
    %c0_i32 = arith.constant 0 : i32
    %c0_i32_0 = arith.constant 0 : i32
    %c0_i32_1 = arith.constant 0 : i32
    return %c0_i32, %c0_i32_0 : i32, i32
  }
  func.func @transform_5(%arg0: i32) -> (i32, i32) {
    %c0_i32 = arith.constant 0 : i32
    %c0_i32_0 = arith.constant 0 : i32
    %c0_i32_1 = arith.constant 0 : i32
    return %c0_i32, %c0_i32_0 : i32, i32
  }
  func.func @transform_6(%arg0: i32) -> (i32, i32) {
    %c0_i32 = arith.constant 0 : i32
    %c0_i32_0 = arith.constant 0 : i32
    %c0_i32_1 = arith.constant 0 : i32
    return %c0_i32, %c0_i32_0 : i32, i32
  }
  func.func @transform_7(%arg0: i32) -> (i32, i32) {
    %c0_i32 = arith.constant 0 : i32
    %c0_i32_0 = arith.constant 0 : i32
    %c0_i32_1 = arith.constant 0 : i32
    return %c0_i32, %c0_i32_0 : i32, i32
  }
  func.func @transform_8(%arg0: i32) -> (i32, i32) {
    %c0_i32 = arith.constant 0 : i32
    %c0_i32_0 = arith.constant 0 : i32
    %c0_i32_1 = arith.constant 0 : i32
    return %c0_i32, %c0_i32_0 : i32, i32
  }
  func.func @transform_9(%arg0: i32) -> (i32, i32) {
    %c0_i32 = arith.constant 0 : i32
    %c0_i32_0 = arith.constant 0 : i32
    return %arg0, %c0_i32 : i32, i32
  }
}

</mosaic_0001>

<llo_original>
// kernel: tpu_custom_call.1
$region0: #{tpu_custom_call.1}
  #allocation0 [shape = 'u32[]', space=smem, size = 0x4, offset = 0x4, fixed_abs, tag = 'smem constant byte address 0x4 - core index']
  #allocation1 [shape = 'u32[144,128]{1,0:T(1,128)}', space=vmem, size = 0x12000, scoped, tag = 'internal scratch']
  #allocation2 [shape = 'f32[1,1]{1,0:T(1,128)S(1)}', space=vmem, size = 0x200, scoped, tag = 'scoped memory for tpu_custom_call.1']
  %s0 = inlined_call_operand.hbm [shape: f32[16,32], index: 0, kind: input, shape index: {}]
  %s1 = inlined_call_operand.hbm [shape: f32[16,32], index: 1, kind: input, shape index: {}]
  %s2 = inlined_call_operand.hbm [shape: f32[16,8,32], index: 2, kind: input, shape index: {}]
  %s3 = inlined_call_operand.hbm [shape: f32[32,32], index: 3, kind: input, shape index: {}]
  %s4 = inlined_call_operand.hbm [shape: f32[32,32], index: 4, kind: input, shape index: {}]
  %s5 = inlined_call_operand.hbm [shape: f32[32,32], index: 5, kind: input, shape index: {}]
  %s6 = inlined_call_operand.vmem [shape: f32[1,32], index: 6, kind: input, shape index: {}]
  %s7 = inlined_call_operand.vmem [shape: f32[1,32], index: 7, kind: input, shape index: {}]
  %s8 = inlined_call_operand.<no memory space> [shape: f32[1,1], index: 8, kind: input, shape index: {}]
  %s9 = inlined_call_operand.vmem [shape: f32[16,8], index: 9, kind: output, shape index: {}]
  %s10 = sld [smem:[#allocation0]]
  $region93: #{tpu_custom_call.1} parent=0
    _
  %s12 = ssub.s32 1, %s10
  %s13 = scalar_select 0, %s12, %s10
  %v14 = vstv %s8
  %15 = vst [vmem:[#allocation2] sm:$0x1] %v14
  $region1: #{tpu_custom_call.1} parent=0
    #allocation3 [shape = 'u8[8192]{0}', space=vmem, size = 0x2000, scoped, tag = 'input window, operand 0']
    #allocation4 [shape = 's32[2]{0}', space=sflag, size = 0x8, scoped, tag = 'scoped memory for tpu_custom_call.1']
    #allocation5 [shape = 'u8[8192]{0}', space=vmem, size = 0x2000, scoped, tag = 'input window, operand 1']
    #allocation6 [shape = 's32[2]{0}', space=sflag, size = 0x8, scoped, tag = 'scoped memory for tpu_custom_call.1']
    #allocation7 [shape = 'u8[65536]{0}', space=vmem, size = 0x10000, scoped, tag = 'input window, operand 2']
    #allocation8 [shape = 'u8[16384]{0}', space=vmem, size = 0x4000, scoped, tag = 'input window, operand 3, single buffered']
    #allocation9 [shape = 's32[1]{0}', space=sflag, size = 0x4, scoped, tag = 'scoped memory for tpu_custom_call.1']
    #allocation10 [shape = 'u8[16384]{0}', space=vmem, size = 0x4000, scoped, tag = 'input window, operand 4, single buffered']
    #allocation11 [shape = 'u8[16384]{0}', space=vmem, size = 0x4000, scoped, tag = 'input window, operand 5, single buffered']
    #allocation12 [shape = 's32[1]{0}', space=sflag, size = 0x4, scoped, tag = 'scoped memory for tpu_custom_call.1']
    %16 = vsyncpa [#allocation4], 0
    %s17 = scalar_lea.sflag [#allocation4], 1
    %18 = vsyncpa %s17, 0
    %19 = vsyncpa [#allocation6], 0
    %s20 = scalar_lea.sflag [#allocation6], 1
    %21 = vsyncpa %s20, 0
    %22 = vsyncpa [#allocation9], 0
    %23 = vsyncpa [#allocation12], 0
    loop: start=0, step=1, limit=4
    $region2: #{tpu_custom_call.1} parent=1 // loop_pre_header
      _
    $region3: #{tpu_custom_call.1} parent=1 // loop_header
      %s25 = sphi 0, %s29
      %p26 = scmp.ge.s32.totalorder %s25, 4
      %s35 = sphi 0, %s37
      %s38 = sphi 0, %s35
      %s39 = sphi 0, %s38
      %s55 = sphi 0, %s39
      %s61 = sphi 0, %s63
      %s64 = sphi 0, %s61
      %s65 = sphi 0, %s64
      %s81 = sphi 0, %s65
      %s87 = sphi 0, %s89
      %s90 = sphi 0, %s87
      %s91 = sphi 0, %s90
      %s107 = sphi 0, %s91
      %s111 = sphi 0, %s111
      %s113 = sphi 0, %s111
      %s114 = sphi 0, %s113
      %s128 = sphi 0, %s114
      %s132 = sphi 0, %s132
      %s134 = sphi 0, %s132
      %s135 = sphi 0, %s134
      %s149 = sphi 0, %s135
      %s153 = sphi 0, %s153
      %s155 = sphi 0, %s153
      %s156 = sphi 0, %s155
      %s170 = sphi 0, %s156
      %s174 = sphi 0, %s174
      %s176 = sphi 0, %s174
      %s177 = sphi 0, %s176
      %s191 = sphi 0, %s177
      %s195 = sphi 0, %s195
      %s197 = sphi 0, %s195
      %s198 = sphi 0, %s197
      %s212 = sphi 0, %s198
      %s216 = sphi 0, %s216
      %s218 = sphi 0, %s216
      %s219 = sphi 0, %s218
      %s233 = sphi 0, %s219
      %s239 = sphi 0, %s241
      %s242 = sphi 0, %s239
      %s243 = sphi 0, %s242
      %s259 = sphi 0, %s243
    $region4: #{tpu_custom_call.1} parent=1 // loop_header_branch
      %28 = sbr.rel (%p26) target = $region8
    $region5: #{tpu_custom_call.1} parent=1 // loop_body
      %s30 = ssub.s32 %s25, 1
      %s31 = ssub.s32 %s25, 2
      %s32 = sadd.s32 %s25, 1
      %s33 = ssub.s32 %s25, %s32
      %p34 = scmp.eq.s32.totalorder %s33, 0
      %s36 = sadd.s32 %s35, 1
      %s37 = scalar_select %p34, %s35, %s36
      %p40 = pneg %p34
      %p41 = scmp.eq.s32.totalorder %s25, 1
      %p42 = por %p40, %p41
      %p43 = scmp.ne.s32.totalorder %s35, %s38
      %p44 = scmp.eq.s32.totalorder %s25, 0
      %p45 = por %p43, %p44
      %p46 = scmp.ne.s32.totalorder %s35, %s38
      %p47 = scmp.eq.s32.totalorder %s30, 1
      %p48 = por %p46, %p47
      %p49 = scmp.ne.s32.totalorder %s38, %s39
      %p50 = scmp.eq.s32.totalorder %s30, 0
      %p51 = por %p49, %p50
      %p52 = scmp.ne.s32.totalorder %s38, %s39
      %p53 = scmp.eq.s32.totalorder %s31, 1
      %p54 = por %p52, %p53
      %p56 = scmp.ne.s32.totalorder %s39, %s55
      %p57 = scmp.eq.s32.totalorder %s31, 0
      %p58 = por %p56, %p57
      %s59 = ssub.s32 %s25, %s32
      %p60 = scmp.eq.s32.totalorder %s59, 0
      %s62 = sadd.s32 %s61, 1
      %s63 = scalar_select %p60, %s61, %s62
      %p66 = pneg %p60
      %p67 = scmp.eq.s32.totalorder %s25, 1
      %p68 = por %p66, %p67
      %p69 = scmp.ne.s32.totalorder %s61, %s64
      %p70 = scmp.eq.s32.totalorder %s25, 0
      %p71 = por %p69, %p70
      %p72 = scmp.ne.s32.totalorder %s61, %s64
      %p73 = scmp.eq.s32.totalorder %s30, 1
      %p74 = por %p72, %p73
      %p75 = scmp.ne.s32.totalorder %s64, %s65
      %p76 = scmp.eq.s32.totalorder %s30, 0
      %p77 = por %p75, %p76
      %p78 = scmp.ne.s32.totalorder %s64, %s65
      %p79 = scmp.eq.s32.totalorder %s31, 1
      %p80 = por %p78, %p79
      %p82 = scmp.ne.s32.totalorder %s65, %s81
      %p83 = scmp.eq.s32.totalorder %s31, 0
      %p84 = por %p82, %p83
      %s85 = ssub.s32 %s25, %s32
      %p86 = scmp.eq.s32.totalorder %s85, 0
      %s88 = sadd.s32 %s87, 1
      %s89 = scalar_select %p86, %s87, %s88
      %p92 = pneg %p86
      %p93 = scmp.eq.s32.totalorder %s25, 1
      %p94 = por %p92, %p93
      %p95 = scmp.ne.s32.totalorder %s87, %s90
      %p96 = scmp.eq.s32.totalorder %s25, 0
      %p97 = por %p95, %p96
      %p98 = scmp.ne.s32.totalorder %s87, %s90
      %p99 = scmp.eq.s32.totalorder %s30, 1
      %p100 = por %p98, %p99
      %p101 = scmp.ne.s32.totalorder %s90, %s91
      %p102 = scmp.eq.s32.totalorder %s30, 0
      %p103 = por %p101, %p102
      %p104 = scmp.ne.s32.totalorder %s90, %s91
      %p105 = scmp.eq.s32.totalorder %s31, 1
      %p106 = por %p104, %p105
      %p108 = scmp.ne.s32.totalorder %s91, %s107
      %p109 = scmp.eq.s32.totalorder %s31, 0
      %p110 = por %p108, %p109
      %s112 = sadd.s32 %s111, 1
      %p115 = scmp.eq.s32.totalorder %s25, 1
      %p116 = scmp.ne.s32.totalorder %s111, %s113
      %p117 = scmp.eq.s32.totalorder %s25, 0
      %p118 = por %p116, %p117
      %p119 = scmp.ne.s32.totalorder %s111, %s113
      %p120 = scmp.eq.s32.totalorder %s30, 1
      %p121 = por %p119, %p120
      %p122 = scmp.ne.s32.totalorder %s113, %s114
      %p123 = scmp.eq.s32.totalorder %s30, 0
      %p124 = por %p122, %p123
      %p125 = scmp.ne.s32.totalorder %s113, %s114
      %p126 = scmp.eq.s32.totalorder %s31, 1
      %p127 = por %p125, %p126
      %p129 = scmp.ne.s32.totalorder %s114, %s128
      %p130 = scmp.eq.s32.totalorder %s31, 0
      %p131 = por %p129, %p130
      %s133 = sadd.s32 %s132, 1
      %p136 = scmp.eq.s32.totalorder %s25, 1
      %p137 = scmp.ne.s32.totalorder %s132, %s134
      %p138 = scmp.eq.s32.totalorder %s25, 0
      %p139 = por %p137, %p138
      %p140 = scmp.ne.s32.totalorder %s132, %s134
      %p141 = scmp.eq.s32.totalorder %s30, 1
      %p142 = por %p140, %p141
      %p143 = scmp.ne.s32.totalorder %s134, %s135
      %p144 = scmp.eq.s32.totalorder %s30, 0
      %p145 = por %p143, %p144
      %p146 = scmp.ne.s32.totalorder %s134, %s135
      %p147 = scmp.eq.s32.totalorder %s31, 1
      %p148 = por %p146, %p147
      %p150 = scmp.ne.s32.totalorder %s135, %s149
      %p151 = scmp.eq.s32.totalorder %s31, 0
      %p152 = por %p150, %p151
      %s154 = sadd.s32 %s153, 1
      %p157 = scmp.eq.s32.totalorder %s25, 1
      %p158 = scmp.ne.s32.totalorder %s153, %s155
      %p159 = scmp.eq.s32.totalorder %s25, 0
      %p160 = por %p158, %p159
      %p161 = scmp.ne.s32.totalorder %s153, %s155
      %p162 = scmp.eq.s32.totalorder %s30, 1
      %p163 = por %p161, %p162
      %p164 = scmp.ne.s32.totalorder %s155, %s156
      %p165 = scmp.eq.s32.totalorder %s30, 0
      %p166 = por %p164, %p165
      %p167 = scmp.ne.s32.totalorder %s155, %s156
      %p168 = scmp.eq.s32.totalorder %s31, 1
      %p169 = por %p167, %p168
      %p171 = scmp.ne.s32.totalorder %s156, %s170
      %p172 = scmp.eq.s32.totalorder %s31, 0
      %p173 = por %p171, %p172
      %s175 = sadd.s32 %s174, 1
      %p178 = scmp.eq.s32.totalorder %s25, 1
      %p179 = scmp.ne.s32.totalorder %s174, %s176
      %p180 = scmp.eq.s32.totalorder %s25, 0
      %p181 = por %p179, %p180
      %p182 = scmp.ne.s32.totalorder %s174, %s176
      %p183 = scmp.eq.s32.totalorder %s30, 1
      %p184 = por %p182, %p183
      %p185 = scmp.ne.s32.totalorder %s176, %s177
      %p186 = scmp.eq.s32.totalorder %s30, 0
      %p187 = por %p185, %p186
      %p188 = scmp.ne.s32.totalorder %s176, %s177
      %p189 = scmp.eq.s32.totalorder %s31, 1
      %p190 = por %p188, %p189
      %p192 = scmp.ne.s32.totalorder %s177, %s191
      %p193 = scmp.eq.s32.totalorder %s31, 0
      %p194 = por %p192, %p193
      %s196 = sadd.s32 %s195, 1
      %p199 = scmp.eq.s32.totalorder %s25, 1
      %p200 = scmp.ne.s32.totalorder %s195, %s197
      %p201 = scmp.eq.s32.totalorder %s25, 0
      %p202 = por %p200, %p201
      %p203 = scmp.ne.s32.totalorder %s195, %s197
      %p204 = scmp.eq.s32.totalorder %s30, 1
      %p205 = por %p203, %p204
      %p206 = scmp.ne.s32.totalorder %s197, %s198
      %p207 = scmp.eq.s32.totalorder %s30, 0
      %p208 = por %p206, %p207
      %p209 = scmp.ne.s32.totalorder %s197, %s198
      %p210 = scmp.eq.s32.totalorder %s31, 1
      %p211 = por %p209, %p210
      %p213 = scmp.ne.s32.totalorder %s198, %s212
      %p214 = scmp.eq.s32.totalorder %s31, 0
      %p215 = por %p213, %p214
      %s217 = sadd.s32 %s216, 1
      %p220 = scmp.eq.s32.totalorder %s25, 1
      %p221 = scmp.ne.s32.totalorder %s216, %s218
      %p222 = scmp.eq.s32.totalorder %s25, 0
      %p223 = por %p221, %p222
      %p224 = scmp.ne.s32.totalorder %s216, %s218
      %p225 = scmp.eq.s32.totalorder %s30, 1
      %p226 = por %p224, %p225
      %p227 = scmp.ne.s32.totalorder %s218, %s219
      %p228 = scmp.eq.s32.totalorder %s30, 0
      %p229 = por %p227, %p228
      %p230 = scmp.ne.s32.totalorder %s218, %s219
      %p231 = scmp.eq.s32.totalorder %s31, 1
      %p232 = por %p230, %p231
      %p234 = scmp.ne.s32.totalorder %s219, %s233
      %p235 = scmp.eq.s32.totalorder %s31, 0
      %p236 = por %p234, %p235
      %s237 = ssub.s32 %s25, %s32
      %p238 = scmp.eq.s32.totalorder %s237, 0
      %s240 = sadd.s32 %s239, 1
      %s241 = scalar_select %p238, %s239, %s240
      %p244 = pneg %p238
      %p245 = scmp.eq.s32.totalorder %s25, 1
      %p246 = por %p244, %p245
      %p247 = scmp.ne.s32.totalorder %s239, %s242
      %p248 = scmp.eq.s32.totalorder %s25, 0
      %p249 = por %p247, %p248
      %p250 = scmp.ne.s32.totalorder %s239, %s242
      %p251 = scmp.eq.s32.totalorder %s30, 1
      %p252 = por %p250, %p251
      %p253 = scmp.ne.s32.totalorder %s242, %s243
      %p254 = scmp.eq.s32.totalorder %s30, 0
      %p255 = por %p253, %p254
      %p256 = scmp.ne.s32.totalorder %s242, %s243
      %p257 = scmp.eq.s32.totalorder %s31, 1
      %p258 = por %p256, %p257
      %p260 = scmp.ne.s32.totalorder %s243, %s259
      %p261 = scmp.eq.s32.totalorder %s31, 0
      %p262 = por %p260, %p261
      %p263 = scmp.le.s32.totalorder 1, %s25
      %p264 = scmp.lt.s32.totalorder %s25, 3
      %p265 = pnand %p263, %p264
      %p266 = pneg %p265
      // Predicated region
      $region9: #{tpu_custom_call.1} parent=5 // pred_check
        _
      $region10: #{tpu_custom_call.1} parent=5 // pred_check_branch
        %268 = sbr.rel (%p265) target = $region12
      $region11: #{tpu_custom_call.1} parent=5 // pred_region
        %s269 = ssub.s32 %s25, 1
        // Predicated region
        $region13: #{tpu_custom_call.1} parent=11 // pred_check
          %p270 = pneg %p124
        $region14: #{tpu_custom_call.1} parent=11 // pred_check_branch
          %272 = sbr.rel (%p270) target = $region16
        $region15: #{tpu_custom_call.1} parent=11 // pred_region
          %s274 = ssub.s32 512, 512
          %275 = vsyncadd [#allocation9], %s274
          %s276 = sshll.u32 [#allocation8], 4
          %s277 = int_to_ptr.vmem [resolvable:$true] %s276
          %282 = dma.hbm_to_vmem [thread:$0]  %s3, 512, %s277, [#allocation9], 128, 128, 8
        $region16: #{tpu_custom_call.1} parent=11 // pred_fallthru
          _
        // Predicated region
        $region17: #{tpu_custom_call.1} parent=11 // pred_check
          %p283 = pneg %p145
        $region18: #{tpu_custom_call.1} parent=11 // pred_check_branch
          %285 = sbr.rel (%p283) target = $region20
        $region19: #{tpu_custom_call.1} parent=11 // pred_region
          %s287 = ssub.s32 512, 512
          %288 = vsyncadd [#allocation9], %s287
          %s289 = sshll.u32 [#allocation10], 4
          %s290 = int_to_ptr.vmem [resolvable:$true] %s289
          %295 = dma.hbm_to_vmem [thread:$0]  %s4, 512, %s290, [#allocation9], 128, 128, 8
        $region20: #{tpu_custom_call.1} parent=11 // pred_fallthru
          _
        // Predicated region
        $region21: #{tpu_custom_call.1} parent=11 // pred_check
          %p296 = pneg %p166
        $region22: #{tpu_custom_call.1} parent=11 // pred_check_branch
          %298 = sbr.rel (%p296) target = $region24
        $region23: #{tpu_custom_call.1} parent=11 // pred_region
          %s300 = ssub.s32 512, 512
          %301 = vsyncadd [#allocation12], %s300
          %s302 = sshll.u32 [#allocation11], 4
          %s303 = int_to_ptr.vmem [resolvable:$true] %s302
          %308 = dma.hbm_to_vmem [thread:$0]  %s5, 512, %s303, [#allocation12], 128, 128, 8
        $region24: #{tpu_custom_call.1} parent=11 // pred_fallthru
          _
        // Predicated region
        $region25: #{tpu_custom_call.1} parent=11 // pred_check
          %p309 = pneg %p187
        $region26: #{tpu_custom_call.1} parent=11 // pred_check_branch
          %311 = sbr.rel (%p309) target = $region28
        $region27: #{tpu_custom_call.1} parent=11 // pred_region
          _
        $region28: #{tpu_custom_call.1} parent=11 // pred_fallthru
          _
        // Predicated region
        $region29: #{tpu_custom_call.1} parent=11 // pred_check
          %p312 = pneg %p208
        $region30: #{tpu_custom_call.1} parent=11 // pred_check_branch
          %314 = sbr.rel (%p312) target = $region32
        $region31: #{tpu_custom_call.1} parent=11 // pred_region
          _
        $region32: #{tpu_custom_call.1} parent=11 // pred_fallthru
          _
        // Predicated region
        $region33: #{tpu_custom_call.1} parent=11 // pred_check
          %p315 = pneg %p229
        $region34: #{tpu_custom_call.1} parent=11 // pred_check_branch
          %317 = sbr.rel (%p315) target = $region36
        $region35: #{tpu_custom_call.1} parent=11 // pred_region
          _
        $region36: #{tpu_custom_call.1} parent=11 // pred_fallthru
          _
      $region12: #{tpu_custom_call.1} parent=5 // pred_fallthru
        _
      %p318 = scmp.lt.s32.totalorder %s25, 2
      // Predicated region
      $region37: #{tpu_custom_call.1} parent=5 // pred_check
        %p319 = pneg %p318
      $region38: #{tpu_custom_call.1} parent=5 // pred_check_branch
        %321 = sbr.rel (%p319) target = $region40
      $region39: #{tpu_custom_call.1} parent=5 // pred_region
        // Predicated region
        $region41: #{tpu_custom_call.1} parent=39 // pred_check
          %p322 = pneg %p45
        $region42: #{tpu_custom_call.1} parent=39 // pred_check_branch
          %324 = sbr.rel (%p322) target = $region44
        $region43: #{tpu_custom_call.1} parent=39 // pred_region
          %s325 = sand.u32 %s35, 1
          %s326 = scalar_lea.sflag [#allocation4], %s325
          %s327 = sand.u32 %s35, 1
          %s328 = smul.addr %s327, 8
          %s329 = scalar_lea.vmem [#allocation3], %s328
          %s331 = ssub.s32 128, 128
          %332 = vsyncadd %s326, %s331
          %s333 = smul.addr %s25, 128
          %s334 = scalar_lea.hbm %s0, %s333
          %s336 = sshll.u32 %s329, 4
          %s337 = int_to_ptr.vmem [resolvable:$true] %s336
          %339 = dma.hbm_to_vmem [thread:$0]  %s334, 128, %s337, %s326
        $region44: #{tpu_custom_call.1} parent=39 // pred_fallthru
          _
        // Predicated region
        $region45: #{tpu_custom_call.1} parent=39 // pred_check
          %p340 = pneg %p71
        $region46: #{tpu_custom_call.1} parent=39 // pred_check_branch
          %342 = sbr.rel (%p340) target = $region48
        $region47: #{tpu_custom_call.1} parent=39 // pred_region
          %s343 = sand.u32 %s25, 1
          %s344 = scalar_lea.sflag [#allocation6], %s343
          %s345 = sand.u32 %s61, 1
          %s346 = smul.addr %s345, 8
          %s347 = scalar_lea.vmem [#allocation5], %s346
          %s349 = ssub.s32 128, 128
          %350 = vsyncadd %s344, %s349
          %s351 = smul.addr %s25, 128
          %s352 = scalar_lea.hbm %s1, %s351
          %s354 = sshll.u32 %s347, 4
          %s355 = int_to_ptr.vmem [resolvable:$true] %s354
          %357 = dma.hbm_to_vmem [thread:$0]  %s352, 128, %s355, %s344
        $region48: #{tpu_custom_call.1} parent=39 // pred_fallthru
          _
        // Predicated region
        $region49: #{tpu_custom_call.1} parent=39 // pred_check
          %p358 = pneg %p97
        $region50: #{tpu_custom_call.1} parent=39 // pred_check_branch
          %360 = sbr.rel (%p358) target = $region52
        $region51: #{tpu_custom_call.1} parent=39 // pred_region
          %s361 = sand.u32 %s25, 1
          %s362 = scalar_lea.sflag [#allocation6], %s361
          %s363 = sand.u32 %s87, 1
          %s364 = smul.addr %s363, 64
          %s365 = scalar_lea.vmem [#allocation7], %s364
          %s366 = smul.u32 8, %s25
          %s368 = ssub.s32 1024, 1024
          %369 = vsyncadd %s362, %s368
          %s370 = smul.addr %s366, 128
          %s371 = scalar_lea.hbm %s2, %s370
          %s372 = sshll.u32 %s365, 4
          %s373 = int_to_ptr.vmem [resolvable:$true] %s372
          %378 = dma.hbm_to_vmem [thread:$0]  %s371, 1024, %s373, %s362, 128, 128, 8
        $region52: #{tpu_custom_call.1} parent=39 // pred_fallthru
          _
      $region40: #{tpu_custom_call.1} parent=5 // pred_fallthru
        _
      %p379 = scmp.le.s32.totalorder 1, %s25
      %p380 = scmp.lt.s32.totalorder %s25, 3
      %p381 = pnand %p379, %p380
      %p382 = pneg %p381
      // Predicated region
      $region53: #{tpu_custom_call.1} parent=5 // pred_check
        _
      $region54: #{tpu_custom_call.1} parent=5 // pred_check_branch
        %384 = sbr.rel (%p381) target = $region56
      $region55: #{tpu_custom_call.1} parent=5 // pred_region
        %s385 = ssub.s32 %s25, 1
        %s386 = sand.u32 %s38, 1
        %s387 = scalar_lea.sflag [#allocation4], %s386
        %s388 = sand.u32 %s38, 1
        %s389 = smul.addr %s388, 8
        %s390 = scalar_lea.vmem [#allocation3], %s389
        // Predicated region
        $region57: #{tpu_custom_call.1} parent=55 // pred_check
          %p391 = pneg %p51
        $region58: #{tpu_custom_call.1} parent=55 // pred_check_branch
          %393 = sbr.rel (%p391) target = $region60
        $region59: #{tpu_custom_call.1} parent=55 // pred_region
          %394 = dma.done %s387, 128
        $region60: #{tpu_custom_call.1} parent=55 // pred_fallthru
          _
        %s395 = sand.u32 %s30, 1
        %s396 = scalar_lea.sflag [#allocation6], %s395
        %s397 = sand.u32 %s64, 1
        %s398 = smul.addr %s397, 8
        %s399 = scalar_lea.vmem [#allocation5], %s398
        // Predicated region
        $region61: #{tpu_custom_call.1} parent=55 // pred_check
          %p400 = pneg %p77
        $region62: #{tpu_custom_call.1} parent=55 // pred_check_branch
          %402 = sbr.rel (%p400) target = $region64
        $region63: #{tpu_custom_call.1} parent=55 // pred_region
          %403 = dma.done %s396, 128
        $region64: #{tpu_custom_call.1} parent=55 // pred_fallthru
          _
        %s404 = sand.u32 %s30, 1
        %s405 = scalar_lea.sflag [#allocation6], %s404
        %s406 = sand.u32 %s90, 1
        %s407 = smul.addr %s406, 64
        %s408 = scalar_lea.vmem [#allocation7], %s407
        // Predicated region
        $region65: #{tpu_custom_call.1} parent=55 // pred_check
          %p409 = pneg %p103
        $region66: #{tpu_custom_call.1} parent=55 // pred_check_branch
          %411 = sbr.rel (%p409) target = $region68
        $region67: #{tpu_custom_call.1} parent=55 // pred_region
          %412 = dma.done %s405, 1024
        $region68: #{tpu_custom_call.1} parent=55 // pred_fallthru
          _
        // Predicated region
        $region69: #{tpu_custom_call.1} parent=55 // pred_check
          %p413 = pneg %p124
        $region70: #{tpu_custom_call.1} parent=55 // pred_check_branch
          %415 = sbr.rel (%p413) target = $region72
        $region71: #{tpu_custom_call.1} parent=55 // pred_region
          %416 = dma.done [#allocation9], 512
        $region72: #{tpu_custom_call.1} parent=55 // pred_fallthru
          _
        // Predicated region
        $region73: #{tpu_custom_call.1} parent=55 // pred_check
          %p417 = pneg %p145
        $region74: #{tpu_custom_call.1} parent=55 // pred_check_branch
          %419 = sbr.rel (%p417) target = $region76
        $region75: #{tpu_custom_call.1} parent=55 // pred_region
          %420 = dma.done [#allocation9], 512
        $region76: #{tpu_custom_call.1} parent=55 // pred_fallthru
          _
        // Predicated region
        $region77: #{tpu_custom_call.1} parent=55 // pred_check
          %p421 = pneg %p166
        $region78: #{tpu_custom_call.1} parent=55 // pred_check_branch
          %423 = sbr.rel (%p421) target = $region80
        $region79: #{tpu_custom_call.1} parent=55 // pred_region
          %424 = dma.done [#allocation12], 512
        $region80: #{tpu_custom_call.1} parent=55 // pred_fallthru
          _
        %s425 = sand.u32 %s38, 1
        %s426 = scalar_lea.sflag [#allocation4], %s425
        %s427 = sand.u32 %s38, 1
        %s428 = smul.addr %s427, 8
        %s429 = scalar_lea.vmem [#allocation3], %s428
        %p430 = pneg %p51
        %p431 = pneg %p48
        %s432 = sand.u32 %s30, 1
        %s433 = scalar_lea.sflag [#allocation6], %s432
        %s434 = sand.u32 %s64, 1
        %s435 = smul.addr %s434, 8
        %s436 = scalar_lea.vmem [#allocation5], %s435
        %p437 = pneg %p77
        %p438 = pneg %p74
        %s439 = sand.u32 %s30, 1
        %s440 = scalar_lea.sflag [#allocation6], %s439
        %s441 = sand.u32 %s90, 1
        %s442 = smul.addr %s441, 64
        %s443 = scalar_lea.vmem [#allocation7], %s442
        %p444 = pneg %p103
        %p445 = pneg %p100
        %p446 = pneg %p124
        %p447 = pneg %p121
        %p448 = pneg %p145
        %p449 = pneg %p142
        %p450 = pneg %p166
        %p451 = pneg %p163
        %p452 = pneg %p187
        %p453 = pneg %p184
        %p454 = pneg %p208
        %p455 = pneg %p205
        %p456 = pneg %p229
        %p457 = pneg %p226
        %p458 = pneg %p255
        %p459 = pneg %p252
        %p460 = scmp.lt.s32.totalorder %s30, 1
        %s461 = scalar_select %p460, %s30, 1
        %s462 = smul.addr %s461, 8
        %s463 = scalar_lea.vmem %s9, %s462
        %s464 = smul.u32 8, %s30
        %p465 = scmp.lt.s32.totalorder %s30, 1
        %s466 = scalar_select %p465, %s30, 1
        %s467 = smul.addr %s466, 8
        %s468 = scalar_lea.vmem %s9, %s467
        %v469 = vld [vmem:[%s390] sm:$0xff]
        %v470 = vld [vmem:[%s399] sm:$0xff]
        %v471 = vld [vmem:[%s408] sm:$0xff]
        %v472 = vld [vmem:[%s408 + $0x8] sm:$0xff]
        %v473 = vld [vmem:[%s408 + $0x10] sm:$0xff]
        %v474 = vld [vmem:[%s408 + $0x18] sm:$0xff]
        %v475 = vld [vmem:[%s408 + $0x20] sm:$0xff]
        %v476 = vld [vmem:[%s408 + $0x28] sm:$0xff]
        %v477 = vld [vmem:[%s408 + $0x30] sm:$0xff]
        %v478 = vld [vmem:[%s408 + $0x38] sm:$0xff]
        %v479 = vld [vmem:[#allocation8] sm:$0xff]
        %v480 = vld [vmem:[#allocation8 + $0x8] sm:$0xff]
        %v481 = vld [vmem:[#allocation8 + $0x10] sm:$0xff]
        %v482 = vld [vmem:[#allocation8 + $0x18] sm:$0xff]
        %v483 = vld [vmem:[#allocation10] sm:$0xff]
        %v484 = vld [vmem:[#allocation10 + $0x8] sm:$0xff]
        %v485 = vld [vmem:[#allocation10 + $0x10] sm:$0xff]
        %v486 = vld [vmem:[#allocation10 + $0x18] sm:$0xff]
        %vm487 = vcmask 261120
        %v489 = vsel %vm487, %v470, 0
        %491 = vmatprep.subr.mxu0 0.0
        %492 = vmatpush1.msra.mxu0 %v483
        %493 = vmatprep.subr.mxu0 0.0
        %494 = vmatpush1.msra.mxu0 %v484
        %495 = vmatprep.subr.mxu0 0.0
        %496 = vmatpush1.msra.mxu0 %v485
        %497 = vmatprep.subr.mxu0 0.0
        %498 = vmatpush1.msra.mxu0 %v486
        %499 = vmatprep.subr.mxu0 0.0
        %500 = vmatpush1.msra.mxu0 0.0
        %501 = vmatprep.subr.mxu0 0.0
        %502 = vmatpush1.msra.mxu0 0.0
        %503 = vmatprep.subr.mxu0 0.0
        %504 = vmatpush1.msra.mxu0 0.0
        %505 = vmatprep.subr.mxu0 0.0
        %506 = vmatpush1.msra.mxu0 0.0
        %507 = vmatprep.subr.mxu0 0.0
        %508 = vmatpush1.msra.mxu0 0.0
        %509 = vmatprep.subr.mxu0 0.0
        %510 = vmatpush1.msra.mxu0 0.0
        %511 = vmatprep.subr.mxu0 0.0
        %512 = vmatpush1.msra.mxu0 0.0
        %513 = vmatprep.subr.mxu0 0.0
        %514 = vmatpush1.msra.mxu0 0.0
        %515 = vmatprep.subr.mxu0 0.0
        %516 = vmatpush1.msra.mxu0 0.0
        %517 = vmatprep.subr.mxu0 0.0
        %518 = vmatpush1.msra.mxu0 0.0
        %519 = vmatprep.subr.mxu0 0.0
        %520 = vmatpush1.msra.mxu0 0.0
        %521 = vmatprep.subr.mxu0 0.0
        %522 = vmatpush1.msra.mxu0 0.0
        %523 = vmatprep.subr.mxu0 0.0
        %524 = vmatpush1.msra.mxu0 0.0
        %525 = vmatprep.subr.mxu0 0.0
        %526 = vmatpush1.msra.mxu0 0.0
        %527 = vmatprep.subr.mxu0 0.0
        %528 = vmatpush1.msra.mxu0 0.0
        %529 = vmatprep.subr.mxu0 0.0
        %530 = vmatpush1.msra.mxu0 0.0
        %531 = vmatprep.subr.mxu0 0.0
        %532 = vmatpush1.msra.mxu0 0.0
        %533 = vmatprep.subr.mxu0 0.0
        %534 = vmatpush1.msra.mxu0 0.0
        %535 = vmatprep.subr.mxu0 0.0
        %536 = vmatpush1.msra.mxu0 0.0
        %537 = vmatprep.subr.mxu0 0.0
        %538 = vmatpush1.msra.mxu0 0.0
        %539 = vmatprep.subr.mxu0 0.0
        %540 = vmatpush1.msra.mxu0 0.0
        %541 = vmatprep.subr.mxu0 0.0
        %542 = vmatpush1.msra.mxu0 0.0
        %543 = vmatprep.subr.mxu0 0.0
        %544 = vmatpush1.msra.mxu0 0.0
        %545 = vmatprep.subr.mxu0 0.0
        %546 = vmatpush1.msra.mxu0 0.0
        %547 = vmatprep.subr.mxu0 0.0
        %548 = vmatpush1.msra.mxu0 0.0
        %549 = vmatprep.subr.mxu0 0.0
        %550 = vmatpush1.msra.mxu0 0.0
        %551 = vmatprep.subr.mxu0 0.0
        %552 = vmatpush1.msra.mxu0 0.0
        %553 = vmatprep.subr.mxu0 0.0
        %554 = vmatpush1.msra.mxu0 0.0
        %555 = vmatprep.mubr.f32.mxu0 0.0
        %556 = vmatmul.mubr.f32.gmra.mrb[0].mxu0 %v489
        %v557 = vpop.f32.mrb[0].mxu0
        %v558 = vadd.f32 0.0, %v557
        %v559 = vpop.f32.mrb[0].mxu0
        %560 = vdwg.mxu0
        %v562 = vsel %vm487, %v469, 0
        %564 = vmatprep.subr.mxu0 0.0
        %565 = vmatpush1.msra.mxu0 %v479
        %566 = vmatprep.subr.mxu0 0.0
        %567 = vmatpush1.msra.mxu0 %v480
        %568 = vmatprep.subr.mxu0 0.0
        %569 = vmatpush1.msra.mxu0 %v481
        %570 = vmatprep.subr.mxu0 0.0
        %571 = vmatpush1.msra.mxu0 %v482
        %572 = vmatprep.subr.mxu0 0.0
        %573 = vmatpush1.msra.mxu0 0.0
        %574 = vmatprep.subr.mxu0 0.0
        %575 = vmatpush1.msra.mxu0 0.0
        %576 = vmatprep.subr.mxu0 0.0
        %577 = vmatpush1.msra.mxu0 0.0
        %578 = vmatprep.subr.mxu0 0.0
        %579 = vmatpush1.msra.mxu0 0.0
        %580 = vmatprep.subr.mxu0 0.0
        %581 = vmatpush1.msra.mxu0 0.0
        %582 = vmatprep.subr.mxu0 0.0
        %583 = vmatpush1.msra.mxu0 0.0
        %584 = vmatprep.subr.mxu0 0.0
        %585 = vmatpush1.msra.mxu0 0.0
        %586 = vmatprep.subr.mxu0 0.0
        %587 = vmatpush1.msra.mxu0 0.0
        %588 = vmatprep.subr.mxu0 0.0
        %589 = vmatpush1.msra.mxu0 0.0
        %590 = vmatprep.subr.mxu0 0.0
        %591 = vmatpush1.msra.mxu0 0.0
        %592 = vmatprep.subr.mxu0 0.0
        %593 = vmatpush1.msra.mxu0 0.0
        %594 = vmatprep.subr.mxu0 0.0
        %595 = vmatpush1.msra.mxu0 0.0
        %596 = vmatprep.subr.mxu0 0.0
        %597 = vmatpush1.msra.mxu0 0.0
        %598 = vmatprep.subr.mxu0 0.0
        %599 = vmatpush1.msra.mxu0 0.0
        %600 = vmatprep.subr.mxu0 0.0
        %601 = vmatpush1.msra.mxu0 0.0
        %602 = vmatprep.subr.mxu0 0.0
        %603 = vmatpush1.msra.mxu0 0.0
        %604 = vmatprep.subr.mxu0 0.0
        %605 = vmatpush1.msra.mxu0 0.0
        %606 = vmatprep.subr.mxu0 0.0
        %607 = vmatpush1.msra.mxu0 0.0
        %608 = vmatprep.subr.mxu0 0.0
        %609 = vmatpush1.msra.mxu0 0.0
        %610 = vmatprep.subr.mxu0 0.0
        %611 = vmatpush1.msra.mxu0 0.0
        %612 = vmatprep.subr.mxu0 0.0
        %613 = vmatpush1.msra.mxu0 0.0
        %614 = vmatprep.subr.mxu0 0.0
        %615 = vmatpush1.msra.mxu0 0.0
        %616 = vmatprep.subr.mxu0 0.0
        %617 = vmatpush1.msra.mxu0 0.0
        %618 = vmatprep.subr.mxu0 0.0
        %619 = vmatpush1.msra.mxu0 0.0
        %620 = vmatprep.subr.mxu0 0.0
        %621 = vmatpush1.msra.mxu0 0.0
        %622 = vmatprep.subr.mxu0 0.0
        %623 = vmatpush1.msra.mxu0 0.0
        %624 = vmatprep.subr.mxu0 0.0
        %625 = vmatpush1.msra.mxu0 0.0
        %626 = vmatprep.subr.mxu0 0.0
        %627 = vmatpush1.msra.mxu0 0.0
        %628 = vmatprep.mubr.f32.mxu0 0.0
        %629 = vmatmul.mubr.f32.gmra.mrb[0].mxu0 %v562
        %v630 = vpop.f32.mrb[0].mxu0
        %v631 = vadd.f32 %v558, %v630
        %v632 = vpop.f32.mrb[0].mxu0
        %633 = vdwg.mxu0
        %v634 = vld [vmem:[%s6] sm:$0x1]
        %v636 = vlaneseq
        %v637 = vshrl.u32 %v636, 7
        %v638 = vsub.s32 0, %v637
        %v639 = vrot.slane %v634, %v638
        %v641 = vadd.f32 %v631, %v639
        %v642 = vld [vmem:[#allocation11] sm:$0xff]
        %v643 = vld [vmem:[#allocation11 + $0x8] sm:$0xff]
        %v644 = vld [vmem:[#allocation11 + $0x10] sm:$0xff]
        %v645 = vld [vmem:[#allocation11 + $0x18] sm:$0xff]
        %v647 = vsel %vm487, %v471, 0
        %v650 = vsel %vm487, %v472, 0
        %v653 = vsel %vm487, %v473, 0
        %v656 = vsel %vm487, %v474, 0
        %v659 = vsel %vm487, %v475, 0
        %v662 = vsel %vm487, %v476, 0
        %v665 = vsel %vm487, %v477, 0
        %v668 = vsel %vm487, %v478, 0
        %670 = vmatprep.subr.mxu0 0.0
        %671 = vmatpush1.msra.mxu0 %v642
        %672 = vmatprep.subr.mxu0 0.0
        %673 = vmatpush1.msra.mxu0 %v643
        %674 = vmatprep.subr.mxu0 0.0
        %675 = vmatpush1.msra.mxu0 %v644
        %676 = vmatprep.subr.mxu0 0.0
        %677 = vmatpush1.msra.mxu0 %v645
        %678 = vmatprep.subr.mxu0 0.0
        %679 = vmatpush1.msra.mxu0 0.0
        %680 = vmatprep.subr.mxu0 0.0
        %681 = vmatpush1.msra.mxu0 0.0
        %682 = vmatprep.subr.mxu0 0.0
        %683 = vmatpush1.msra.mxu0 0.0
        %684 = vmatprep.subr.mxu0 0.0
        %685 = vmatpush1.msra.mxu0 0.0
        %686 = vmatprep.subr.mxu0 0.0
        %687 = vmatpush1.msra.mxu0 0.0
        %688 = vmatprep.subr.mxu0 0.0
        %689 = vmatpush1.msra.mxu0 0.0
        %690 = vmatprep.subr.mxu0 0.0
        %691 = vmatpush1.msra.mxu0 0.0
        %692 = vmatprep.subr.mxu0 0.0
        %693 = vmatpush1.msra.mxu0 0.0
        %694 = vmatprep.subr.mxu0 0.0
        %695 = vmatpush1.msra.mxu0 0.0
        %696 = vmatprep.subr.mxu0 0.0
        %697 = vmatpush1.msra.mxu0 0.0
        %698 = vmatprep.subr.mxu0 0.0
        %699 = vmatpush1.msra.mxu0 0.0
        %700 = vmatprep.subr.mxu0 0.0
        %701 = vmatpush1.msra.mxu0 0.0
        %702 = vmatprep.subr.mxu0 0.0
        %703 = vmatpush1.msra.mxu0 0.0
        %704 = vmatprep.subr.mxu0 0.0
        %705 = vmatpush1.msra.mxu0 0.0
        %706 = vmatprep.subr.mxu0 0.0
        %707 = vmatpush1.msra.mxu0 0.0
        %708 = vmatprep.subr.mxu0 0.0
        %709 = vmatpush1.msra.mxu0 0.0
        %710 = vmatprep.subr.mxu0 0.0
        %711 = vmatpush1.msra.mxu0 0.0
        %712 = vmatprep.subr.mxu0 0.0
        %713 = vmatpush1.msra.mxu0 0.0
        %714 = vmatprep.subr.mxu0 0.0
        %715 = vmatpush1.msra.mxu0 0.0
        %716 = vmatprep.subr.mxu0 0.0
        %717 = vmatpush1.msra.mxu0 0.0
        %718 = vmatprep.subr.mxu0 0.0
        %719 = vmatpush1.msra.mxu0 0.0
        %720 = vmatprep.subr.mxu0 0.0
        %721 = vmatpush1.msra.mxu0 0.0
        %722 = vmatprep.subr.mxu0 0.0
        %723 = vmatpush1.msra.mxu0 0.0
        %724 = vmatprep.subr.mxu0 0.0
        %725 = vmatpush1.msra.mxu0 0.0
        %726 = vmatprep.subr.mxu0 0.0
        %727 = vmatpush1.msra.mxu0 0.0
        %728 = vmatprep.subr.mxu0 0.0
        %729 = vmatpush1.msra.mxu0 0.0
        %730 = vmatprep.subr.mxu0 0.0
        %731 = vmatpush1.msra.mxu0 0.0
        %732 = vmatprep.subr.mxu0 0.0
        %733 = vmatpush1.msra.mxu0 0.0
        %734 = vmatprep.mubr.f32.mxu0 0.0
        %735 = vmatmul.mubr.f32.gmra.mrb[0].mxu0 %v647
        %v736 = vpop.f32.mrb[0].mxu0
        %v737 = vadd.f32 0.0, %v736
        %v738 = vpop.f32.mrb[0].mxu0
        %739 = vmatprep.mubr.f32.mxu0 0.0
        %740 = vmatmul.mubr.f32.gmra.mrb[0].mxu0 %v650
        %v741 = vpop.f32.mrb[0].mxu0
        %v742 = vadd.f32 0.0, %v741
        %v743 = vpop.f32.mrb[0].mxu0
        %744 = vmatprep.mubr.f32.mxu0 0.0
        %745 = vmatmul.mubr.f32.gmra.mrb[0].mxu0 %v653
        %v746 = vpop.f32.mrb[0].mxu0
        %v747 = vadd.f32 0.0, %v746
        %v748 = vpop.f32.mrb[0].mxu0
        %749 = vmatprep.mubr.f32.mxu0 0.0
        %750 = vmatmul.mubr.f32.gmra.mrb[0].mxu0 %v656
        %v751 = vpop.f32.mrb[0].mxu0
        %v752 = vadd.f32 0.0, %v751
        %v753 = vpop.f32.mrb[0].mxu0
        %754 = vmatprep.mubr.f32.mxu0 0.0
        %755 = vmatmul.mubr.f32.gmra.mrb[0].mxu0 %v659
        %v756 = vpop.f32.mrb[0].mxu0
        %v757 = vadd.f32 0.0, %v756
        %v758 = vpop.f32.mrb[0].mxu0
        %759 = vmatprep.mubr.f32.mxu0 0.0
        %760 = vmatmul.mubr.f32.gmra.mrb[0].mxu0 %v662
        %v761 = vpop.f32.mrb[0].mxu0
        %v762 = vadd.f32 0.0, %v761
        %v763 = vpop.f32.mrb[0].mxu0
        %764 = vmatprep.mubr.f32.mxu0 0.0
        %765 = vmatmul.mubr.f32.gmra.mrb[0].mxu0 %v665
        %v766 = vpop.f32.mrb[0].mxu0
        %v767 = vadd.f32 0.0, %v766
        %v768 = vpop.f32.mrb[0].mxu0
        %769 = vmatprep.mubr.f32.mxu0 0.0
        %770 = vmatmul.mubr.f32.gmra.mrb[0].mxu0 %v668
        %v771 = vpop.f32.mrb[0].mxu0
        %v772 = vadd.f32 0.0, %v771
        %v773 = vpop.f32.mrb[0].mxu0
        %774 = vdwg.mxu0
        %v776 = vcombine.high %v641, %v641
        %v778 = vunpack.c.l.s4 1966171168
        %v779 = vunpack.c.0.s8 %v778
        %v780 = vlaneseq
        %v781 = vshrl.u32 %v780, 7
        %v782 = vsub.s32 %v779, %v781
        %v783 = vrot.slane %v641, %v782
        %v785 = vunpack.c.l.s4 1966171168
        %v786 = vunpack.c.0.s8 %v785
        %v787 = vlaneseq
        %v788 = vshrl.u32 %v787, 7
        %v789 = vsub.s32 %v786, %v788
        %v790 = vrot.slane %v776, %v789
        %v791 = vcombine.high %v783, %v783
        %v792 = vcombine.high %v790, %v790
        %v794 = vunpack.c.l.s4 1966171168
        %v795 = vunpack.c.0.s8 %v794
        %v796 = vlaneseq
        %v797 = vshrl.u32 %v796, 7
        %v798 = vsub.s32 %v795, %v797
        %v799 = vrot.slane %v783, %v798
        %v801 = vunpack.c.l.s4 1966171168
        %v802 = vunpack.c.0.s8 %v801
        %v803 = vlaneseq
        %v804 = vshrl.u32 %v803, 7
        %v805 = vsub.s32 %v802, %v804
        %v806 = vrot.slane %v790, %v805
        %v808 = vunpack.c.l.s4 1966171168
        %v809 = vunpack.c.0.s8 %v808
        %v810 = vlaneseq
        %v811 = vshrl.u32 %v810, 7
        %v812 = vsub.s32 %v809, %v811
        %v813 = vrot.slane %v791, %v812
        %v815 = vunpack.c.l.s4 1966171168
        %v816 = vunpack.c.0.s8 %v815
        %v817 = vlaneseq
        %v818 = vshrl.u32 %v817, 7
        %v819 = vsub.s32 %v816, %v818
        %v820 = vrot.slane %v792, %v819
        %v821 = vcombine.high %v799, %v799
        %v822 = vcombine.high %v806, %v806
        %v823 = vcombine.high %v813, %v813
        %v824 = vcombine.high %v820, %v820
        %v825 = vlaneseq
        %v826 = vshrl.u32 %v825, 7
        %v827 = vsub.s32 0, %v826
        %v828 = vrot.slane %v799, %v827
        %v829 = vlaneseq
        %v830 = vshrl.u32 %v829, 7
        %v831 = vsub.s32 0, %v830
        %v832 = vrot.slane %v813, %v831
        %v833 = vlaneseq
        %v834 = vshrl.u32 %v833, 7
        %v835 = vsub.s32 0, %v834
        %v836 = vrot.slane %v821, %v835
        %v837 = vlaneseq
        %v838 = vshrl.u32 %v837, 7
        %v839 = vsub.s32 0, %v838
        %v840 = vrot.slane %v823, %v839
        %v841 = vlaneseq
        %v842 = vshrl.u32 %v841, 7
        %v843 = vsub.s32 0, %v842
        %v844 = vrot.slane %v806, %v843
        %v845 = vlaneseq
        %v846 = vshrl.u32 %v845, 7
        %v847 = vsub.s32 0, %v846
        %v848 = vrot.slane %v820, %v847
        %v849 = vlaneseq
        %v850 = vshrl.u32 %v849, 7
        %v851 = vsub.s32 0, %v850
        %v852 = vrot.slane %v822, %v851
        %v853 = vlaneseq
        %v854 = vshrl.u32 %v853, 7
        %v855 = vsub.s32 0, %v854
        %v856 = vrot.slane %v824, %v855
        %v865 = vadd.f32 %v737, %v828
        %v866 = vadd.f32 %v742, %v832
        %v867 = vadd.f32 %v747, %v836
        %v868 = vadd.f32 %v752, %v840
        %v869 = vadd.f32 %v757, %v844
        %v870 = vadd.f32 %v762, %v848
        %v871 = vadd.f32 %v767, %v852
        %v872 = vadd.f32 %v772, %v856
        %vm873 = vcmp.ge.f32.partialorder %v865, 0.0
        %vm874 = vcmp.ge.f32.partialorder %v866, 0.0
        %vm875 = vcmp.ge.f32.partialorder %v867, 0.0
        %vm876 = vcmp.ge.f32.partialorder %v868, 0.0
        %vm877 = vcmp.ge.f32.partialorder %v869, 0.0
        %vm878 = vcmp.ge.f32.partialorder %v870, 0.0
        %vm879 = vcmp.ge.f32.partialorder %v871, 0.0
        %vm880 = vcmp.ge.f32.partialorder %v872, 0.0
        %v881 = vmul.f32 %v865, 0.01
        %v882 = vmul.f32 %v866, 0.01
        %v883 = vmul.f32 %v867, 0.01
        %v884 = vmul.f32 %v868, 0.01
        %v885 = vmul.f32 %v869, 0.01
        %v886 = vmul.f32 %v870, 0.01
        %v887 = vmul.f32 %v871, 0.01
        %v888 = vmul.f32 %v872, 0.01
        %v889 = vsel %vm873, %v865, %v881
        %v890 = vsel %vm874, %v866, %v882
        %v891 = vsel %vm875, %v867, %v883
        %v892 = vsel %vm876, %v868, %v884
        %v893 = vsel %vm877, %v869, %v885
        %v894 = vsel %vm878, %v870, %v886
        %v895 = vsel %vm879, %v871, %v887
        %v896 = vsel %vm880, %v872, %v888
        %v897 = vld [vmem:[%s7] sm:$0x1]
        %v899 = vlaneseq
        %v900 = vshrl.u32 %v899, 7
        %v901 = vsub.s32 0, %v900
        %v902 = vrot.slane %v897, %v901
        %v904 = vmul.f32 %v889, %v902
        %v905 = vmul.f32 %v890, %v902
        %v906 = vmul.f32 %v891, %v902
        %v907 = vmul.f32 %v892, %v902
        %v908 = vmul.f32 %v893, %v902
        %v909 = vmul.f32 %v894, %v902
        %v910 = vmul.f32 %v895, %v902
        %v911 = vmul.f32 %v896, %v902
        %v912 = vsel %vm487, %v904, 0.0
        %913 = vadd.xlane.f32.xlu0 %v912
        %v914 = vpop.xlane.xlu0 %913
        %v915 = vsel %vm487, %v905, 0.0
        %916 = vadd.xlane.f32.xlu0 %v915
        %v917 = vpop.xlane.xlu0 %916
        %v918 = vsel %vm487, %v906, 0.0
        %919 = vadd.xlane.f32.xlu0 %v918
        %v920 = vpop.xlane.xlu0 %919
        %v921 = vsel %vm487, %v907, 0.0
        %922 = vadd.xlane.f32.xlu0 %v921
        %v923 = vpop.xlane.xlu0 %922
        %v924 = vsel %vm487, %v908, 0.0
        %925 = vadd.xlane.f32.xlu0 %v924
        %v926 = vpop.xlane.xlu0 %925
        %v927 = vsel %vm487, %v909, 0.0
        %928 = vadd.xlane.f32.xlu0 %v927
        %v929 = vpop.xlane.xlu0 %928
        %v930 = vsel %vm487, %v910, 0.0
        %931 = vadd.xlane.f32.xlu0 %v930
        %v932 = vpop.xlane.xlu0 %931
        %v933 = vsel %vm487, %v911, 0.0
        %934 = vadd.xlane.f32.xlu0 %v933
        %v935 = vpop.xlane.xlu0 %934
        %v936 = vld [vmem:[#allocation2] sm:$0x1]
        %v938 = vlaneseq
        %v939 = vshrl.u32 %v938, 7
        %v940 = vsub.s32 0, %v939
        %v941 = vrot.slane %v936, %v940
        %942 = vset.pattern.permute.xlu0 0
        %943 = vperm.xlu0 %942, %v941
        %v944 = vpop.permute.xlu0 %943
        %v946 = vadd.f32 %v914, %v944
        %v947 = vadd.f32 %v917, %v944
        %v948 = vadd.f32 %v920, %v944
        %v949 = vadd.f32 %v923, %v944
        %v950 = vadd.f32 %v926, %v944
        %v951 = vadd.f32 %v929, %v944
        %v952 = vadd.f32 %v932, %v944
        %v953 = vadd.f32 %v935, %v944
        %v962 = vlaneseq
        %v963 = vand.u32 %v962, 127
        %v964 = vlaneseq
        %v965 = vshrl.u32 %v964, 7
        %v966 = vsub.s32 %v963, %v965
        %v967 = vrot.slane %v946, %v966
        %v968 = vlaneseq
        %v969 = vshrl.u32 %v968, 7
        %v970 = vsub.s32 %v963, %v969
        %v971 = vrot.slane %v947, %v970
        %v972 = vlaneseq
        %v973 = vshrl.u32 %v972, 7
        %v974 = vsub.s32 %v963, %v973
        %v975 = vrot.slane %v948, %v974
        %v976 = vlaneseq
        %v977 = vshrl.u32 %v976, 7
        %v978 = vsub.s32 %v963, %v977
        %v979 = vrot.slane %v949, %v978
        %v980 = vlaneseq
        %v981 = vshrl.u32 %v980, 7
        %v982 = vsub.s32 %v963, %v981
        %v983 = vrot.slane %v950, %v982
        %v984 = vlaneseq
        %v985 = vshrl.u32 %v984, 7
        %v986 = vsub.s32 %v963, %v985
        %v987 = vrot.slane %v951, %v986
        %v988 = vlaneseq
        %v989 = vshrl.u32 %v988, 7
        %v990 = vsub.s32 %v963, %v989
        %v991 = vrot.slane %v952, %v990
        %v992 = vlaneseq
        %v993 = vshrl.u32 %v992, 7
        %v994 = vsub.s32 %v963, %v993
        %v995 = vrot.slane %v953, %v994
        %vm996 = vcmask 1041409
        %v997 = vsel %vm996, %v971, %v967
        %vm998 = vcmask 1042434
        %v999 = vsel %vm998, %v975, %v997
        %vm1000 = vcmask 1043459
        %v1001 = vsel %vm1000, %v979, %v999
        %vm1002 = vcmask 1044484
        %v1003 = vsel %vm1002, %v983, %v1001
        %vm1004 = vcmask 1045509
        %v1005 = vsel %vm1004, %v987, %v1003
        %vm1006 = vcmask 1046534
        %v1007 = vsel %vm1006, %v991, %v1005
        %vm1008 = vcmask 1047559
        %v1009 = vsel %vm1008, %v995, %v1007
        %vm1011 = vcmask 64512
        %1012 = vst.msk [vmem:[%s468] sm:$0xff] %vm1011, %v1009
        %p1013 = scmp.lt.s32.totalorder %s30, 1
        %s1014 = scalar_select %p1013, %s30, 1
        %s1015 = smul.addr %s1014, 8
        %s1016 = scalar_lea.vmem %s9, %s1015
        // Predicated region
        $region81: #{tpu_custom_call.1} parent=55 // pred_check
          %p1017 = pneg %p252
        $region82: #{tpu_custom_call.1} parent=55 // pred_check_branch
          %1019 = sbr.rel (%p1017) target = $region84
        $region83: #{tpu_custom_call.1} parent=55 // pred_region
          _
        $region84: #{tpu_custom_call.1} parent=55 // pred_fallthru
          _
      $region56: #{tpu_custom_call.1} parent=5 // pred_fallthru
        _
      %p1020 = scmp.le.s32.totalorder 2, %s25
      // Predicated region
      $region85: #{tpu_custom_call.1} parent=5 // pred_check
        %p1021 = pneg %p1020
      $region86: #{tpu_custom_call.1} parent=5 // pred_check_branch
        %1023 = sbr.rel (%p1021) target = $region88
      $region87: #{tpu_custom_call.1} parent=5 // pred_region
        %s1024 = ssub.s32 %s25, 2
        // Predicated region
        $region89: #{tpu_custom_call.1} parent=87 // pred_check
          %p1025 = pneg %p258
        $region90: #{tpu_custom_call.1} parent=87 // pred_check_branch
          %1027 = sbr.rel (%p1025) target = $region92
        $region91: #{tpu_custom_call.1} parent=87 // pred_region
          %p1028 = scmp.lt.s32.totalorder %s31, 1
          %s1029 = scalar_select %p1028, %s31, 1
          %s1030 = smul.addr %s1029, 8
          %s1031 = scalar_lea.vmem %s9, %s1030
        $region92: #{tpu_custom_call.1} parent=87 // pred_fallthru
          _
      $region88: #{tpu_custom_call.1} parent=5 // pred_fallthru
        _
    $region6: #{tpu_custom_call.1} parent=1 // loop_footer
      %s29 = sadd.s32 1, %s25
    $region7: #{tpu_custom_call.1} parent=1 // loop_footer_branch
      %24 = sbr.rel target = $region3
    $region8: #{tpu_custom_call.1} parent=1 // loop_exit
      _
    %1032 = vsyncpa [#allocation4], 1
    %s1033 = scalar_lea.sflag [#allocation4], 1
    %1034 = vsyncpa %s1033, 1
    %1035 = vsyncpa [#allocation6], 1
    %s1036 = scalar_lea.sflag [#allocation6], 1
    %1037 = vsyncpa %s1036, 1
    %1038 = vsyncpa [#allocation9], 1
    %1039 = vsyncpa [#allocation12], 1

</llo_original>
